<compile_context>
chip_gen: v7x
topology: tpu7x:2x2x1
jax: 0.10.0
libtpu: 0.0.40
codegen_flags: <defaults>
</compile_context>

<pallas_src>
import functools

import jax
import jax.numpy as jnp
from jax.experimental import pallas as pl
from jax.experimental.pallas import tpu as pltpu


def _round_up(x, m):
    return ((x + m - 1) // m) * m


def _ensemble_regress_kernel(p_ref, w1_ref, b1_ref, w2_ref, b2_ref,
                             act_ref, raw_ref, *, activation):
    """Fused regress MLP + final activation.

    p_ref  : (TR, model_num) ensemble predictions tile
    w1_ref : (model_num, hidden)   b1_ref : (1, hidden)
    w2_ref : (hidden, 1)           b2_ref : (1, 1)
    act_ref: (TR, 1) final_activation(regress(p))
    raw_ref: (TR, 1) regress(p)
    """
    p = p_ref[...].astype(jnp.float32)
    w1 = w1_ref[...].astype(jnp.float32)
    b1 = b1_ref[...].astype(jnp.float32)
    w2 = w2_ref[...].astype(jnp.float32)
    b2 = b2_ref[...].astype(jnp.float32)

    # Linear(model_num -> hidden) + ReLU
    h = jnp.dot(p, w1, preferred_element_type=jnp.float32) + b1
    h = jnp.maximum(h, 0.0)
    # Linear(hidden -> 1)
    y = jnp.dot(h, w2, preferred_element_type=jnp.float32) + b2

    raw_ref[...] = y.astype(raw_ref.dtype)

    if activation == "sigmoid":          # static Python branch (traced once)
        a = jax.nn.sigmoid(y)            # exp on the EUP
    elif activation == "tanh":
        a = jnp.tanh(y)
    else:
        a = y
    act_ref[...] = a.astype(act_ref.dtype)


def jtma_ensemble_forward(preds, w1, b1, w2, b2, *, activation="sigmoid",
                          row_tile=1024):
    """Pallas implementation of JTMA_Ensemble.forward (post sub-model inference).

    preds : list/tuple of (B, 1) per-model predictions OR a pre-concatenated
            (B, model_num) array (== torch.cat(preds, dim=1))
    w1,b1 : Linear(model_num, 32) params in (in, out) / (out,) layout
    w2,b2 : Linear(32, 1) params in (in, out) / (out,) layout
    Returns (final_activation(regress(pred)), regress(pred)).
    """
    if isinstance(preds, (list, tuple)):
        ensemble_pred = jnp.concatenate(list(preds), axis=1)
    else:
        ensemble_pred = preds

    rows, model_num = ensemble_pred.shape
    hidden = w1.shape[1]
    b1 = b1.reshape(1, hidden)
    b2 = b2.reshape(1, 1)

    # Large row tiles (amortize ~0.35us/step overhead), no divisibility assert:
    # clamp to the problem size and pad the tail instead.
    rt = _round_up(min(row_tile, _round_up(rows, 8)), 8)
    padded_rows = _round_up(rows, rt)
    if padded_rows != rows:
        ensemble_pred = jnp.pad(ensemble_pred,
                                ((0, padded_rows - rows), (0, 0)))

    kernel = functools.partial(_ensemble_regress_kernel, activation=activation)

    act_p, raw_p = pl.pallas_call(
        kernel,
        out_shape=(
            jax.ShapeDtypeStruct((padded_rows, 1), ensemble_pred.dtype),
            jax.ShapeDtypeStruct((padded_rows, 1), ensemble_pred.dtype),
        ),
        grid_spec=pltpu.PrefetchScalarGridSpec(
            num_scalar_prefetch=0,
            grid=(padded_rows // rt,),
            in_specs=[
                pl.BlockSpec((rt, model_num), lambda r: (r, 0)),
                pl.BlockSpec((model_num, hidden), lambda r: (0, 0)),
                pl.BlockSpec((1, hidden), lambda r: (0, 0)),
                pl.BlockSpec((hidden, 1), lambda r: (0, 0)),
                pl.BlockSpec((1, 1), lambda r: (0, 0)),
            ],
            out_specs=(
                pl.BlockSpec((rt, 1), lambda r: (r, 0)),
                pl.BlockSpec((rt, 1), lambda r: (r, 0)),
            ),
        ),
        compiler_params=pltpu.CompilerParams(
            dimension_semantics=("parallel",),
            vmem_limit_bytes=32 * 1024 * 1024,
        ),
    )(ensemble_pred, w1, b1, w2, b2)

    return act_p[:rows], raw_p[:rows]


def _reference(ensemble_pred, w1, b1, w2, b2, activation="sigmoid"):
    """Pure-JAX reference matching the PyTorch regress + final activation."""
    h = jnp.maximum(ensemble_pred @ w1 + b1[None, :], 0.0)
    y = h @ w2 + b2[None, :]
    if activation == "sigmoid":
        a = jax.nn.sigmoid(y)
    elif activation == "tanh":
        a = jnp.tanh(y)
    else:
        a = y
    return a, y


if __name__ == "__main__":
    # Small shapes consistent with the module: model_num sub-models each
    # producing a (batch, 1) prediction; regress hidden width is fixed at 32.
    batch = 16
    model_num = 4
    hidden = 32
    feat_dim = 8  # input width of the (opaque) sub-models

    key = jax.random.PRNGKey(0)
    kx, kmod, kw1, kb1, kw2, kb2 = jax.random.split(key, 6)

    # TODO(synk): the real forward torch.load()s model_num sub-models from
    #             disk and runs them; their (B, 1) outputs are simulated here
    #             with deterministic linear surrogates in pure JAX.
    x = jax.random.normal(kx, (batch, feat_dim), dtype=jnp.float32)
    surrogate_w = 0.1 * jax.random.normal(
        kmod, (model_num, feat_dim, 1), dtype=jnp.float32)
    preds = [x @ surrogate_w[i] for i in range(model_num)]  # list of (B, 1)

    # regress parameters (JAX (in, out) layout).
    w1 = 0.1 * jax.random.normal(kw1, (model_num, hidden), dtype=jnp.float32)
    b1 = 0.1 * jax.random.normal(kb1, (hidden,), dtype=jnp.float32)
    w2 = 0.1 * jax.random.normal(kw2, (hidden, 1), dtype=jnp.float32)
    b2 = 0.1 * jax.random.normal(kb2, (1,), dtype=jnp.float32)

    act_out, raw_out = jtma_ensemble_forward(preds, w1, b1, w2, b2,
                                             activation="sigmoid")
    act_out = jax.block_until_ready(act_out)
    raw_out = jax.block_until_ready(raw_out)

    ens = jnp.concatenate(preds, axis=1)
    a_ref, y_ref = _reference(ens, w1, b1, w2, b2, activation="sigmoid")

    assert act_out.shape == (batch, 1) and raw_out.shape == (batch, 1)
    assert jnp.allclose(raw_out, y_ref, atol=1e-5, rtol=1e-5), "raw mismatch"
    assert jnp.allclose(act_out, a_ref, atol=1e-5, rtol=1e-5), "act mismatch"

    print("KERNEL_OK")
</pallas_src>

<mosaic_0001>
module attributes {stable_mosaic.version = 11 : i64} {
  func.func @_ensemble_regress_kernel(%arg0: i32, %arg1: memref<16x4xf32, #tpu.memory_space<vmem>>, %arg2: memref<4x32xf32, #tpu.memory_space<vmem>>, %arg3: memref<1x32xf32, #tpu.memory_space<vmem>>, %arg4: memref<32x1xf32, #tpu.memory_space<vmem>>, %arg5: memref<1x1xf32, #tpu.memory_space<vmem>>, %arg6: memref<16x1xf32, #tpu.memory_space<vmem>>, %arg7: memref<16x1xf32, #tpu.memory_space<vmem>>) attributes {dimension_semantics = [#tpu.dimension_semantics<parallel>], iteration_bounds = array<i64: 1>, scalar_prefetch = 0 : i64, scratch_operands = 0 : i64, tpu.core_type = #tpu.core_type<tc>, window_params = [{transform_indices = @transform_0, window_bounds = array<i64: 16, 4>}, {pipeline_mode = #tpu.pipeline_mode<synchronous>, transform_indices = @transform_1, window_bounds = array<i64: 4, 32>}, {pipeline_mode = #tpu.pipeline_mode<synchronous>, transform_indices = @transform_2, window_bounds = array<i64: 1, 32>}, {pipeline_mode = #tpu.pipeline_mode<synchronous>, transform_indices = @transform_3, window_bounds = array<i64: 32, 1>}, {pipeline_mode = #tpu.pipeline_mode<synchronous>, transform_indices = @transform_4, window_bounds = array<i64: 1, 1>}, {transform_indices = @transform_5, window_bounds = array<i64: 16, 1>}, {transform_indices = @transform_6, window_bounds = array<i64: 16, 1>}]} {
    %c0 = arith.constant 0 : index
    %c0_0 = arith.constant 0 : index
    %0 = vector.load %arg1[%c0, %c0_0] : memref<16x4xf32, #tpu.memory_space<vmem>>, vector<16x4xf32>
    %c0_1 = arith.constant 0 : index
    %c0_2 = arith.constant 0 : index
    %1 = vector.load %arg2[%c0_1, %c0_2] : memref<4x32xf32, #tpu.memory_space<vmem>>, vector<4x32xf32>
    %c0_3 = arith.constant 0 : index
    %c0_4 = arith.constant 0 : index
    %2 = vector.load %arg3[%c0_3, %c0_4] : memref<1x32xf32, #tpu.memory_space<vmem>>, vector<1x32xf32>
    %c0_5 = arith.constant 0 : index
    %c0_6 = arith.constant 0 : index
    %3 = vector.load %arg4[%c0_5, %c0_6] : memref<32x1xf32, #tpu.memory_space<vmem>>, vector<32x1xf32>
    %c0_7 = arith.constant 0 : index
    %c0_8 = arith.constant 0 : index
    %4 = vector.load %arg5[%c0_7, %c0_8] : memref<1x1xf32, #tpu.memory_space<vmem>>, vector<1x1xf32>
    %cst = arith.constant dense<0.000000e+00> : vector<16x32xf32>
    %5 = tpu.matmul %0, %1, %cst {dimension_numbers = #tpu.dot_dimension_numbers<[1], [0], [0], [1], [0, 0, 1, 1], [], []>} : vector<16x4xf32>, vector<4x32xf32>, vector<16x32xf32> -> vector<16x32xf32>
    %6 = vector.broadcast %2 : vector<1x32xf32> to vector<16x32xf32>
    %7 = arith.addf %5, %6 : vector<16x32xf32>
    %cst_9 = arith.constant 0.000000e+00 : f32
    %8 = vector.broadcast %cst_9 : f32 to vector<16x32xf32>
    %9 = arith.maximumf %7, %8 : vector<16x32xf32>
    %cst_10 = arith.constant dense<0.000000e+00> : vector<16x1xf32>
    %10 = tpu.matmul %9, %3, %cst_10 {dimension_numbers = #tpu.dot_dimension_numbers<[1], [0], [0], [1], [0, 0, 1, 1], [], []>} : vector<16x32xf32>, vector<32x1xf32>, vector<16x1xf32> -> vector<16x1xf32>
    %11 = vector.broadcast %4 : vector<1x1xf32> to vector<16x1xf32>
    %12 = arith.addf %10, %11 : vector<16x1xf32>
    %c0_11 = arith.constant 0 : index
    %c0_12 = arith.constant 0 : index
    %13 = vector.load %arg7[%c0_11, %c0_12] : memref<16x1xf32, #tpu.memory_space<vmem>>, vector<16x1xf32>
    tpu.vector_store %arg7[%c0_11, %c0_12], %12 {strides = array<i32>} : memref<16x1xf32, #tpu.memory_space<vmem>>, vector<16x1xf32>,
    %14 = arith.negf %12 : vector<16x1xf32>
    %15 = math.exp %14 : vector<16x1xf32>
    %cst_13 = arith.constant 1.000000e+00 : f32
    %16 = vector.broadcast %cst_13 : f32 to vector<16x1xf32>
    %17 = arith.addf %16, %15 : vector<16x1xf32>
    %18 = arith.divf %16, %17 : vector<16x1xf32>
    %c0_14 = arith.constant 0 : index
    %c0_15 = arith.constant 0 : index
    %19 = vector.load %arg6[%c0_14, %c0_15] : memref<16x1xf32, #tpu.memory_space<vmem>>, vector<16x1xf32>
    tpu.vector_store %arg6[%c0_14, %c0_15], %18 {strides = array<i32>} : memref<16x1xf32, #tpu.memory_space<vmem>>, vector<16x1xf32>,
    return
  }
  func.func @transform_0(%arg0: i32) -> (i32, i32) {
    %c0_i32 = arith.constant 0 : i32
    %c0_i32_0 = arith.constant 0 : i32
    return %arg0, %c0_i32 : i32, i32
  }
  func.func @transform_1(%arg0: i32) -> (i32, i32) {
    %c0_i32 = arith.constant 0 : i32
    %c0_i32_0 = arith.constant 0 : i32
    %c0_i32_1 = arith.constant 0 : i32
    return %c0_i32, %c0_i32_0 : i32, i32
  }
  func.func @transform_2(%arg0: i32) -> (i32, i32) {
    %c0_i32 = arith.constant 0 : i32
    %c0_i32_0 = arith.constant 0 : i32
    %c0_i32_1 = arith.constant 0 : i32
    return %c0_i32, %c0_i32_0 : i32, i32
  }
  func.func @transform_3(%arg0: i32) -> (i32, i32) {
    %c0_i32 = arith.constant 0 : i32
    %c0_i32_0 = arith.constant 0 : i32
    %c0_i32_1 = arith.constant 0 : i32
    return %c0_i32, %c0_i32_0 : i32, i32
  }
  func.func @transform_4(%arg0: i32) -> (i32, i32) {
    %c0_i32 = arith.constant 0 : i32
    %c0_i32_0 = arith.constant 0 : i32
    %c0_i32_1 = arith.constant 0 : i32
    return %c0_i32, %c0_i32_0 : i32, i32
  }
  func.func @transform_5(%arg0: i32) -> (i32, i32) {
    %c0_i32 = arith.constant 0 : i32
    %c0_i32_0 = arith.constant 0 : i32
    return %arg0, %c0_i32 : i32, i32
  }
  func.func @transform_6(%arg0: i32) -> (i32, i32) {
    %c0_i32 = arith.constant 0 : i32
    %c0_i32_0 = arith.constant 0 : i32
    return %arg0, %c0_i32 : i32, i32
  }
}

</mosaic_0001>

<llo_original>
// kernel: tpu_custom_call.1
$region0: #{tpu_custom_call.1}
  #allocation0 [shape = 'u32[]', space=smem, size = 0x4, offset = 0x4, fixed_abs, tag = 'smem constant byte address 0x4 - core index']
  #allocation1 [shape = 'u32[144,128]{1,0:T(1,128)}', space=vmem, size = 0x12000, scoped, tag = 'internal scratch']
  #allocation2 [shape = 'f32[1,1]{1,0:T(1,128)S(1)}', space=vmem, size = 0x200, scoped, tag = 'scoped memory for tpu_custom_call.1']
  %s0 = inlined_call_operand.vmem [shape: f32[16,4], index: 0, kind: input, shape index: {}]
  %s1 = inlined_call_operand.vmem [shape: f32[4,32], index: 1, kind: input, shape index: {}]
  %s2 = inlined_call_operand.vmem [shape: f32[1,32], index: 2, kind: input, shape index: {}]
  %s3 = inlined_call_operand.vmem [shape: f32[32,1], index: 3, kind: input, shape index: {}]
  %s4 = inlined_call_operand.<no memory space> [shape: f32[1,1], index: 4, kind: input, shape index: {}]
  %s5 = inlined_call_operand.vmem [shape: f32[16,1], index: 5, kind: output, shape index: {0}]
  %s6 = inlined_call_operand.vmem [shape: f32[16,1], index: 6, kind: output, shape index: {1}]
  %7 = xla_tuple %s5, %s6
  %s8 = sld [smem:[#allocation0]]
  $region38: #{tpu_custom_call.1} parent=0
    _
  %s10 = ssub.s32 1, %s8
  %s11 = scalar_select 0, %s10, %s8
  %v12 = vstv %s4
  %13 = vst [vmem:[#allocation2] sm:$0x1] %v12
  // Predicated region
  $region2: #{tpu_custom_call.1} parent=0 // pred_check
    _
  $region3: #{tpu_custom_call.1} parent=0 // pred_check_branch
    %15 = sbr.rel (0) target = $region5
  $region4: #{tpu_custom_call.1} parent=0 // pred_region
    _
  $region5: #{tpu_custom_call.1} parent=0 // pred_fallthru
    _
  // Predicated region
  $region6: #{tpu_custom_call.1} parent=0 // pred_check
    _
  $region7: #{tpu_custom_call.1} parent=0 // pred_check_branch
    %17 = sbr.rel (0) target = $region9
  $region8: #{tpu_custom_call.1} parent=0 // pred_region
    _
  $region9: #{tpu_custom_call.1} parent=0 // pred_fallthru
    _
  // Predicated region
  $region10: #{tpu_custom_call.1} parent=0 // pred_check
    _
  $region11: #{tpu_custom_call.1} parent=0 // pred_check_branch
    %19 = sbr.rel (0) target = $region13
  $region12: #{tpu_custom_call.1} parent=0 // pred_region
    _
  $region13: #{tpu_custom_call.1} parent=0 // pred_fallthru
    _
  // Predicated region
  $region14: #{tpu_custom_call.1} parent=0 // pred_check
    _
  $region15: #{tpu_custom_call.1} parent=0 // pred_check_branch
    %21 = sbr.rel (0) target = $region17
  $region16: #{tpu_custom_call.1} parent=0 // pred_region
    _
  $region17: #{tpu_custom_call.1} parent=0 // pred_fallthru
    _
  // Predicated region
  $region18: #{tpu_custom_call.1} parent=0 // pred_check
    _
  $region19: #{tpu_custom_call.1} parent=0 // pred_check_branch
    %23 = sbr.rel (0) target = $region21
  $region20: #{tpu_custom_call.1} parent=0 // pred_region
    _
  $region21: #{tpu_custom_call.1} parent=0 // pred_fallthru
    _
  %v24 = vld [vmem:[%s0] sm:$0xff]
  %v25 = vld [vmem:[%s0 + $0x8] sm:$0xff]
  %v26 = vld [vmem:[%s1] sm:$0xf]
  %v27 = vld [vmem:[%s2] sm:$0x1]
  %v28 = vld [vmem:[%s3] sm:$0xff]
  %v29 = vld [vmem:[%s3 + $0x8] sm:$0xff]
  %v30 = vld [vmem:[%s3 + $0x10] sm:$0xff]
  %v31 = vld [vmem:[%s3 + $0x18] sm:$0xff]
  %v32 = vld [vmem:[#allocation2] sm:$0x1]
  %v34 = vlaneseq
  %v35 = vshrl.u32 %v34, 7
  %v36 = vsub.s32 0, %v35
  %v37 = vrot.slane %v27, %v36
  %vm39 = vcmask 31744
  %v41 = vsel %vm39, %v24, 0
  %v44 = vsel %vm39, %v25, 0
  %vm46 = vcmask 1043456
  %v48 = vsel %vm46, %v26, 0
  %50 = vmatprep.subr.mxu0 0.0
  %51 = vmatpush1.msra.mxu0 %v48
  %52 = vmatprep.subr.mxu0 0.0
  %53 = vmatpush1.msra.mxu0 0.0
  %54 = vmatprep.subr.mxu0 0.0
  %55 = vmatpush1.msra.mxu0 0.0
  %56 = vmatprep.subr.mxu0 0.0
  %57 = vmatpush1.msra.mxu0 0.0
  %58 = vmatprep.subr.mxu0 0.0
  %59 = vmatpush1.msra.mxu0 0.0
  %60 = vmatprep.subr.mxu0 0.0
  %61 = vmatpush1.msra.mxu0 0.0
  %62 = vmatprep.subr.mxu0 0.0
  %63 = vmatpush1.msra.mxu0 0.0
  %64 = vmatprep.subr.mxu0 0.0
  %65 = vmatpush1.msra.mxu0 0.0
  %66 = vmatprep.subr.mxu0 0.0
  %67 = vmatpush1.msra.mxu0 0.0
  %68 = vmatprep.subr.mxu0 0.0
  %69 = vmatpush1.msra.mxu0 0.0
  %70 = vmatprep.subr.mxu0 0.0
  %71 = vmatpush1.msra.mxu0 0.0
  %72 = vmatprep.subr.mxu0 0.0
  %73 = vmatpush1.msra.mxu0 0.0
  %74 = vmatprep.subr.mxu0 0.0
  %75 = vmatpush1.msra.mxu0 0.0
  %76 = vmatprep.subr.mxu0 0.0
  %77 = vmatpush1.msra.mxu0 0.0
  %78 = vmatprep.subr.mxu0 0.0
  %79 = vmatpush1.msra.mxu0 0.0
  %80 = vmatprep.subr.mxu0 0.0
  %81 = vmatpush1.msra.mxu0 0.0
  %82 = vmatprep.subr.mxu0 0.0
  %83 = vmatpush1.msra.mxu0 0.0
  %84 = vmatprep.subr.mxu0 0.0
  %85 = vmatpush1.msra.mxu0 0.0
  %86 = vmatprep.subr.mxu0 0.0
  %87 = vmatpush1.msra.mxu0 0.0
  %88 = vmatprep.subr.mxu0 0.0
  %89 = vmatpush1.msra.mxu0 0.0
  %90 = vmatprep.subr.mxu0 0.0
  %91 = vmatpush1.msra.mxu0 0.0
  %92 = vmatprep.subr.mxu0 0.0
  %93 = vmatpush1.msra.mxu0 0.0
  %94 = vmatprep.subr.mxu0 0.0
  %95 = vmatpush1.msra.mxu0 0.0
  %96 = vmatprep.subr.mxu0 0.0
  %97 = vmatpush1.msra.mxu0 0.0
  %98 = vmatprep.subr.mxu0 0.0
  %99 = vmatpush1.msra.mxu0 0.0
  %100 = vmatprep.subr.mxu0 0.0
  %101 = vmatpush1.msra.mxu0 0.0
  %102 = vmatprep.subr.mxu0 0.0
  %103 = vmatpush1.msra.mxu0 0.0
  %104 = vmatprep.subr.mxu0 0.0
  %105 = vmatpush1.msra.mxu0 0.0
  %106 = vmatprep.subr.mxu0 0.0
  %107 = vmatpush1.msra.mxu0 0.0
  %108 = vmatprep.subr.mxu0 0.0
  %109 = vmatpush1.msra.mxu0 0.0
  %110 = vmatprep.subr.mxu0 0.0
  %111 = vmatpush1.msra.mxu0 0.0
  %112 = vmatprep.subr.mxu0 0.0
  %113 = vmatpush1.msra.mxu0 0.0
  %114 = vmatprep.mubr.f32.mxu0 0.0
  %115 = vmatmul.mubr.f32.gmra.mrb[0].mxu0 %v41
  %v116 = vpop.f32.mrb[0].mxu0
  %v117 = vadd.f32 %v37, %v116
  %v118 = vpop.f32.mrb[0].mxu0
  %119 = vmatprep.mubr.f32.mxu0 0.0
  %120 = vmatmul.mubr.f32.gmra.mrb[0].mxu0 %v44
  %v121 = vpop.f32.mrb[0].mxu0
  %v122 = vadd.f32 %v37, %v121
  %v123 = vpop.f32.mrb[0].mxu0
  %124 = vdwg.mxu0
  %v125 = vmax.f32 %v117, 0.0
  %v126 = vmax.f32 %v122, 0.0
  %v128 = vlaneseq
  %v129 = vshrl.u32 %v128, 7
  %v130 = vsub.s32 0, %v129
  %v131 = vrot.slane %v32, %v130
  %vm133 = vcmask 261120
  %v135 = vsel %vm133, %v125, 0
  %v138 = vsel %vm133, %v126, 0
  %140 = vmatprep.subr.mxu0 0.0
  %141 = vmatpush1.msra.mxu0 %v28
  %142 = vmatprep.subr.mxu0 0.0
  %143 = vmatpush1.msra.mxu0 %v29
  %144 = vmatprep.subr.mxu0 0.0
  %145 = vmatpush1.msra.mxu0 %v30
  %146 = vmatprep.subr.mxu0 0.0
  %147 = vmatpush1.msra.mxu0 %v31
  %148 = vmatprep.subr.mxu0 0.0
  %149 = vmatpush1.msra.mxu0 0.0
  %150 = vmatprep.subr.mxu0 0.0
  %151 = vmatpush1.msra.mxu0 0.0
  %152 = vmatprep.subr.mxu0 0.0
  %153 = vmatpush1.msra.mxu0 0.0
  %154 = vmatprep.subr.mxu0 0.0
  %155 = vmatpush1.msra.mxu0 0.0
  %156 = vmatprep.subr.mxu0 0.0
  %157 = vmatpush1.msra.mxu0 0.0
  %158 = vmatprep.subr.mxu0 0.0
  %159 = vmatpush1.msra.mxu0 0.0
  %160 = vmatprep.subr.mxu0 0.0
  %161 = vmatpush1.msra.mxu0 0.0
  %162 = vmatprep.subr.mxu0 0.0
  %163 = vmatpush1.msra.mxu0 0.0
  %164 = vmatprep.subr.mxu0 0.0
  %165 = vmatpush1.msra.mxu0 0.0
  %166 = vmatprep.subr.mxu0 0.0
  %167 = vmatpush1.msra.mxu0 0.0
  %168 = vmatprep.subr.mxu0 0.0
  %169 = vmatpush1.msra.mxu0 0.0
  %170 = vmatprep.subr.mxu0 0.0
  %171 = vmatpush1.msra.mxu0 0.0
  %172 = vmatprep.subr.mxu0 0.0
  %173 = vmatpush1.msra.mxu0 0.0
  %174 = vmatprep.subr.mxu0 0.0
  %175 = vmatpush1.msra.mxu0 0.0
  %176 = vmatprep.subr.mxu0 0.0
  %177 = vmatpush1.msra.mxu0 0.0
  %178 = vmatprep.subr.mxu0 0.0
  %179 = vmatpush1.msra.mxu0 0.0
  %180 = vmatprep.subr.mxu0 0.0
  %181 = vmatpush1.msra.mxu0 0.0
  %182 = vmatprep.subr.mxu0 0.0
  %183 = vmatpush1.msra.mxu0 0.0
  %184 = vmatprep.subr.mxu0 0.0
  %185 = vmatpush1.msra.mxu0 0.0
  %186 = vmatprep.subr.mxu0 0.0
  %187 = vmatpush1.msra.mxu0 0.0
  %188 = vmatprep.subr.mxu0 0.0
  %189 = vmatpush1.msra.mxu0 0.0
  %190 = vmatprep.subr.mxu0 0.0
  %191 = vmatpush1.msra.mxu0 0.0
  %192 = vmatprep.subr.mxu0 0.0
  %193 = vmatpush1.msra.mxu0 0.0
  %194 = vmatprep.subr.mxu0 0.0
  %195 = vmatpush1.msra.mxu0 0.0
  %196 = vmatprep.subr.mxu0 0.0
  %197 = vmatpush1.msra.mxu0 0.0
  %198 = vmatprep.subr.mxu0 0.0
  %199 = vmatpush1.msra.mxu0 0.0
  %200 = vmatprep.subr.mxu0 0.0
  %201 = vmatpush1.msra.mxu0 0.0
  %202 = vmatprep.subr.mxu0 0.0
  %203 = vmatpush1.msra.mxu0 0.0
  %204 = vmatprep.mubr.f32.mxu0 0.0
  %205 = vmatmul.mubr.f32.gmra.mrb[0].mxu0 %v135
  %v206 = vpop.f32.mrb[0].mxu0
  %v207 = vadd.f32 %v131, %v206
  %v208 = vpop.f32.mrb[0].mxu0
  %209 = vmatprep.mubr.f32.mxu0 0.0
  %210 = vmatmul.mubr.f32.gmra.mrb[0].mxu0 %v138
  %v211 = vpop.f32.mrb[0].mxu0
  %v212 = vadd.f32 %v131, %v211
  %v213 = vpop.f32.mrb[0].mxu0
  %214 = vdwg.mxu0
  %vm215 = vcmask 7168
  %216 = vst.msk [vmem:[%s6] sm:$0xff] %vm215, %v207
  %217 = vst.msk [vmem:[%s6 + $0x8] sm:$0xff] %vm215, %v212
  %v218 = vxor.u32 %v207, 2147483648
  %v219 = vxor.u32 %v212, 2147483648
  %v220 = vmul.f32 %v218, 1.442695
  %v221 = vpow.pop %v220
  %v222 = vmul.f32 %v219, 1.442695
  %v223 = vpow.pop %v222
  %v224 = vadd.f32 %v221, 1.0
  %v225 = vadd.f32 %v223, 1.0
  %v226 = vrcp.pop %v224
  %v227 = vmul.f32 1.0, %v226
  %v228 = vrcp.pop %v225
  %v229 = vmul.f32 1.0, %v228
  %230 = vst.msk [vmem:[%s5] sm:$0xff] %vm215, %v227
  %231 = vst.msk [vmem:[%s5 + $0x8] sm:$0xff] %vm215, %v229
  // Predicated region
  $region22: #{tpu_custom_call.1} parent=0 // pred_check
    _
  $region23: #{tpu_custom_call.1} parent=0 // pred_check_branch
    %233 = sbr.rel (0) target = $region25
  $region24: #{tpu_custom_call.1} parent=0 // pred_region
    _
  $region25: #{tpu_custom_call.1} parent=0 // pred_fallthru
    _
  // Predicated region
  $region26: #{tpu_custom_call.1} parent=0 // pred_check
    _
  $region27: #{tpu_custom_call.1} parent=0 // pred_check_branch
    %235 = sbr.rel (0) target = $region29
  $region28: #{tpu_custom_call.1} parent=0 // pred_region
    _
  $region29: #{tpu_custom_call.1} parent=0 // pred_fallthru
    _
  // Predicated region
  $region30: #{tpu_custom_call.1} parent=0 // pred_check
    _
  $region31: #{tpu_custom_call.1} parent=0 // pred_check_branch
    %237 = sbr.rel (0) target = $region33
  $region32: #{tpu_custom_call.1} parent=0 // pred_region
    _
  $region33: #{tpu_custom_call.1} parent=0 // pred_fallthru
    _
  // Predicated region
  $region34: #{tpu_custom_call.1} parent=0 // pred_check
    _
  $region35: #{tpu_custom_call.1} parent=0 // pred_check_branch
    %239 = sbr.rel (0) target = $region37
  $region36: #{tpu_custom_call.1} parent=0 // pred_region
    _
  $region37: #{tpu_custom_call.1} parent=0 // pred_fallthru
    _

</llo_original>
